<compile_context>
chip_gen: v5e
topology: v5e:2x2
jax: 0.10.0
libtpu: 0.0.40
codegen_flags: <defaults>
</compile_context>

<pallas_src>
import functools

import jax
import jax.numpy as jnp
from jax.experimental import pallas as pl
from jax.experimental.pallas import tpu as pltpu


def _acmnet_loss_kernel(pred_ref, d_ref, r_ref, t_ref, m_ref, rgb_ref,
                        out_ref,
                        acc_cnt, acc_mse, acc_dx, acc_dy,
                        prev_pred, prev_rgb,
                        *, gamma, inv_n_dx, inv_n_dy):
    b = pl.program_id(0)
    h = pl.program_id(1)
    nb = pl.num_programs(0)
    nh = pl.num_programs(1)

    g0, g1, g2 = gamma
    third = 1.0 / 3.0

    # ---- init accumulators on the very first grid step ----
    @pl.when((b == 0) & (h == 0))
    def _init():
        acc_cnt[...] = jnp.zeros_like(acc_cnt)
        acc_mse[...] = jnp.zeros_like(acc_mse)
        acc_dx[...] = jnp.zeros_like(acc_dx)
        acc_dy[...] = jnp.zeros_like(acc_dy)

    pred = pred_ref[...].astype(jnp.float32)     # (TH, W)
    d_o = d_ref[...].astype(jnp.float32)
    r_o = r_ref[...].astype(jnp.float32)
    tgt = t_ref[...].astype(jnp.float32)
    msk = m_ref[...].astype(jnp.float32)         # 0/1
    r0 = rgb_ref[0].astype(jnp.float32)          # (TH, W)
    r1 = rgb_ref[1].astype(jnp.float32)
    r2 = rgb_ref[2].astype(jnp.float32)

    TH, W = pred.shape

    # ---- masked MSE partial sums (3 branches folded with their gamma weights) ----
    ef = pred - tgt
    ed = d_o - tgt
    er = r_o - tgt
    sq = (ef * ef + g0 * (ed * ed) + g1 * (er * er)) * msk
    acc_mse[...] += jnp.sum(sq, axis=0, keepdims=True)
    acc_cnt[...] += jnp.sum(msk, axis=0, keepdims=True)

    # ---- edge-aware smoothness, x-direction (lane axis) ----
    if W > 1:
        pdx = jnp.abs(pred[:, :-1] - pred[:, 1:])
        wdx = jnp.exp(-(jnp.abs(r0[:, :-1] - r0[:, 1:]) +
                        jnp.abs(r1[:, :-1] - r1[:, 1:]) +
                        jnp.abs(r2[:, :-1] - r2[:, 1:])) * third)
        acc_dx[0:1, 0:W - 1] += jnp.sum(pdx * wdx, axis=0, keepdims=True)

    # ---- edge-aware smoothness, y-direction: rows fully inside this tile ----
    if TH > 1:
        pdy = jnp.abs(pred[:-1, :] - pred[1:, :])
        wdy = jnp.exp(-(jnp.abs(r0[:-1, :] - r0[1:, :]) +
                        jnp.abs(r1[:-1, :] - r1[1:, :]) +
                        jnp.abs(r2[:-1, :] - r2[1:, :])) * third)
        acc_dy[...] += jnp.sum(pdy * wdy, axis=0, keepdims=True)

    # ---- y-direction row that straddles the tile boundary (uses carried rows) ----
    @pl.when(h > 0)
    def _boundary():
        pdb = jnp.abs(prev_pred[...] - pred[0:1, :])                    # (1, W)
        wdb = jnp.exp(-(jnp.abs(prev_rgb[0:1, :] - r0[0:1, :]) +
                        jnp.abs(prev_rgb[1:2, :] - r1[0:1, :]) +
                        jnp.abs(prev_rgb[2:3, :] - r2[0:1, :])) * third)
        acc_dy[...] += pdb * wdb

    # carry this tile's last row forward (h is the innermost grid axis)
    prev_pred[...] = pred[TH - 1:TH, :]
    prev_rgb[0:1, :] = r0[TH - 1:TH, :]
    prev_rgb[1:2, :] = r1[TH - 1:TH, :]
    prev_rgb[2:3, :] = r2[TH - 1:TH, :]

    # ---- finalize: one cross-lane reduce + scalar combine on the last step ----
    @pl.when((b == nb - 1) & (h == nh - 1))
    def _fin():
        numel = jnp.sum(acc_cnt[...])
        mse = jnp.sum(acc_mse[...]) / numel       # NaN if mask empty (matches torch)
        smooth = (jnp.sum(acc_dx[...]) * inv_n_dx +
                  jnp.sum(acc_dy[...]) * inv_n_dy)
        out_ref[0, 0] = mse + g2 * 0.5 * smooth


def _pick_tile_h(H, W, bytes_per_elem, budget_bytes=8 * 1024 * 1024):
    """Largest multiple-of-8 divisor of H whose double-buffered block fits the budget."""
    max_rows = max(1, budget_bytes // max(1, 2 * W * bytes_per_elem))
    if H <= max_rows:
        return H
    cands = [d for d in range(8, H, 8) if H % d == 0 and d <= max_rows]
    return max(cands) if cands else H   # fall back to whole-H blocks (always legal)


def acmnet_loss(pred, d_out, r_out, target, target_mask, rgb,
                gamma=(0.5, 0.5, 0.01), tile_h=None):
    """pred/d_out/r_out/target/target_mask: (B,1,H,W); rgb: (B,3,H,W). Returns scalar f32."""
    B, C, H, W = pred.shape
    assert C == 1 and rgb.shape == (B, 3, H, W)

    # mask goes in as f32 (bool * float semantics, and keeps row tiles (8,128)-legal)
    if target_mask.dtype != jnp.float32:
        target_mask = target_mask.astype(jnp.float32)

    bytes_per_elem = 8 * 4  # 5 single-channel planes + 3 rgb planes, f32
    if tile_h is None:
        tile_h = _pick_tile_h(H, W, bytes_per_elem)
    assert H % tile_h == 0 and (tile_h % 8 == 0 or tile_h == H), tile_h
    n_h = H // tile_h

    gamma = tuple(float(g) for g in gamma)
    n_dx = B * H * (W - 1)
    n_dy = B * (H - 1) * W
    kernel = functools.partial(
        _acmnet_loss_kernel, gamma=gamma,
        inv_n_dx=1.0 / max(n_dx, 1), inv_n_dy=1.0 / max(n_dy, 1))

    # channel (and batch) dims squeezed directly in the BlockSpec -> no wrapper copies
    sc_spec = pl.BlockSpec((None, None, tile_h, W), lambda b, h: (b, 0, h, 0))
    rgb_spec = pl.BlockSpec((None, 3, tile_h, W), lambda b, h: (b, 0, h, 0))

    block_bytes = 2 * tile_h * W * bytes_per_elem          # double-buffered inputs
    vmem_limit = int(min(64 * 1024 * 1024, max(32 * 1024 * 1024, 4 * block_bytes)))

    cost = pl.CostEstimate(
        flops=int(50 * B * H * W),
        transcendentals=int(2 * B * H * W),
        bytes_accessed=int(B * H * W * bytes_per_elem + 4))

    out = pl.pallas_call(
        kernel,
        out_shape=jax.ShapeDtypeStruct((1, 1), jnp.float32),
        grid=(B, n_h),
        in_specs=[sc_spec, sc_spec, sc_spec, sc_spec, sc_spec, rgb_spec],
        out_specs=pl.BlockSpec(memory_space=pltpu.MemorySpace.SMEM),
        scratch_shapes=[
            pltpu.VMEM((1, W), jnp.float32),   # acc_cnt
            pltpu.VMEM((1, W), jnp.float32),   # acc_mse (gamma-weighted, combined)
            pltpu.VMEM((1, W), jnp.float32),   # acc_dx
            pltpu.VMEM((1, W), jnp.float32),   # acc_dy
            pltpu.VMEM((1, W), jnp.float32),   # carried last pred row
            pltpu.VMEM((3, W), jnp.float32),   # carried last rgb rows
        ],
        compiler_params=pltpu.CompilerParams(
            dimension_semantics=("arbitrary", "arbitrary"),
            vmem_limit_bytes=vmem_limit),
        cost_estimate=cost,
    )(pred, d_out, r_out, target, target_mask, rgb)
    return out[0, 0]


def _acmnet_loss_ref(pred, d_out, r_out, target, target_mask, rgb,
                     gamma=(0.5, 0.5, 0.01)):
    """Pure-JAX reference mirroring the PyTorch module."""
    maskf = target_mask.astype(jnp.float32)
    numel = jnp.sum(maskf)

    def masked_mse(x):
        return jnp.sum((x - target) ** 2 * maskf) / numel

    mse_f = masked_mse(pred)
    mse_d = masked_mse(d_out)
    mse_r = masked_mse(r_out)

    def grad(x):
        dx = x[:, :, :, :-1] - x[:, :, :, 1:]
        dy = x[:, :, :-1, :] - x[:, :, 1:, :]
        return dx, dy

    pred_dx, pred_dy = grad(pred)
    rgb_dx, rgb_dy = grad(rgb)
    wx = jnp.exp(-jnp.mean(jnp.abs(rgb_dx), axis=1, keepdims=True))
    wy = jnp.exp(-jnp.mean(jnp.abs(rgb_dy), axis=1, keepdims=True))
    smooth = jnp.mean(jnp.abs(pred_dx) * wx) + jnp.mean(jnp.abs(pred_dy) * wy)
    return mse_f + gamma[0] * mse_d + gamma[1] * mse_r + gamma[2] * 0.5 * smooth


def _make_inputs(key, B, H, W):
    k1, k2, k3, k4, k5, k6 = jax.random.split(key, 6)
    pred = jax.random.normal(k1, (B, 1, H, W), jnp.float32)
    d_out = jax.random.normal(k2, (B, 1, H, W), jnp.float32)
    r_out = jax.random.normal(k3, (B, 1, H, W), jnp.float32)
    target = jax.random.normal(k4, (B, 1, H, W), jnp.float32)
    target_mask = jax.random.bernoulli(k5, 0.7, (B, 1, H, W))
    rgb = jax.random.uniform(k6, (B, 3, H, W), jnp.float32)
    return pred, d_out, r_out, target, target_mask, rgb


if __name__ == "__main__":
    key = jax.random.PRNGKey(0)
    ka, kb = jax.random.split(key)

    # Case 1: small square (B=2, H=W=16) — whole-H tile and a forced 2-tile split
    # (exercises the cross-tile carry / boundary path and the accumulator pipeline).
    args = _make_inputs(ka, 2, 16, 16)
    ref = jax.block_until_ready(_acmnet_loss_ref(*args))
    loss_a = jax.block_until_ready(acmnet_loss(*args))
    loss_b = jax.block_until_ready(acmnet_loss(*args, tile_h=8))
    assert jnp.allclose(loss_a, ref, rtol=1e-4, atol=1e-5), (loss_a, ref)
    assert jnp.allclose(loss_b, ref, rtol=1e-4, atol=1e-5), (loss_b, ref)

    # Case 2: lane-width 128 (B=1, H=16, W=128) with row tiling — exercises the
    # same single code path at a full-native-lane width.
    args2 = _make_inputs(kb, 1, 16, 128)
    ref2 = jax.block_until_ready(_acmnet_loss_ref(*args2))
    loss_c = jax.block_until_ready(acmnet_loss(*args2, tile_h=8))
    assert jnp.allclose(loss_c, ref2, rtol=1e-4, atol=1e-5), (loss_c, ref2)

    print("KERNEL_OK")
</pallas_src>

<mosaic_0001>
module attributes {stable_mosaic.version = 11 : i64} {
  func.func @_acmnet_loss_kernel(%arg0: i32, %arg1: i32, %arg2: memref<1x1x16x16xf32, #tpu.memory_space<vmem>>, %arg3: memref<1x1x16x16xf32, #tpu.memory_space<vmem>>, %arg4: memref<1x1x16x16xf32, #tpu.memory_space<vmem>>, %arg5: memref<1x1x16x16xf32, #tpu.memory_space<vmem>>, %arg6: memref<1x1x16x16xf32, #tpu.memory_space<vmem>>, %arg7: memref<1x3x16x16xf32, #tpu.memory_space<vmem>>, %arg8: memref<1x1xf32, #tpu.memory_space<smem>>, %arg9: memref<1x16xf32, #tpu.memory_space<vmem>>, %arg10: memref<1x16xf32, #tpu.memory_space<vmem>>, %arg11: memref<1x16xf32, #tpu.memory_space<vmem>>, %arg12: memref<1x16xf32, #tpu.memory_space<vmem>>, %arg13: memref<1x16xf32, #tpu.memory_space<vmem>>, %arg14: memref<3x16xf32, #tpu.memory_space<vmem>>) attributes {dimension_semantics = [#tpu.dimension_semantics<arbitrary>, #tpu.dimension_semantics<arbitrary>], iteration_bounds = array<i64: 2, 1>, scalar_prefetch = 0 : i64, scratch_operands = 6 : i64, tpu.core_type = #tpu.core_type<tc>, window_params = [{transform_indices = @transform_0, window_bounds = array<i64: 1, 1, 16, 16>}, {transform_indices = @transform_1, window_bounds = array<i64: 1, 1, 16, 16>}, {transform_indices = @transform_2, window_bounds = array<i64: 1, 1, 16, 16>}, {transform_indices = @transform_3, window_bounds = array<i64: 1, 1, 16, 16>}, {transform_indices = @transform_4, window_bounds = array<i64: 1, 1, 16, 16>}, {transform_indices = @transform_5, window_bounds = array<i64: 1, 3, 16, 16>}, {transform_indices = @transform_6, window_bounds = array<i64: 1, 1>}]} {
    %c0_i32 = arith.constant 0 : i32
    %0 = arith.cmpi eq, %arg0, %c0_i32 : i32
    %c0_i32_0 = arith.constant 0 : i32
    %1 = arith.cmpi eq, %arg1, %c0_i32_0 : i32
    %2 = arith.andi %0, %1 : i1
    %3 = arith.extui %2 : i1 to i32
    %c0_i32_1 = arith.constant 0 : i32
    %4 = arith.cmpi ne, %3, %c0_i32_1 : i32
    scf.if %4 {
      %cst_68 = arith.constant 0.000000e+00 : f32
      %118 = vector.broadcast %cst_68 : f32 to vector<1x16xf32>
      %c0_69 = arith.constant 0 : index
      %c0_70 = arith.constant 0 : index
      %119 = vector.load %arg9[%c0_69, %c0_70] : memref<1x16xf32, #tpu.memory_space<vmem>>, vector<1x16xf32>
      tpu.vector_store %arg9[%c0_69, %c0_70], %118 {strides = array<i32>} : memref<1x16xf32, #tpu.memory_space<vmem>>, vector<1x16xf32>,
      %cst_71 = arith.constant 0.000000e+00 : f32
      %120 = vector.broadcast %cst_71 : f32 to vector<1x16xf32>
      %c0_72 = arith.constant 0 : index
      %c0_73 = arith.constant 0 : index
      %121 = vector.load %arg10[%c0_72, %c0_73] : memref<1x16xf32, #tpu.memory_space<vmem>>, vector<1x16xf32>
      tpu.vector_store %arg10[%c0_72, %c0_73], %120 {strides = array<i32>} : memref<1x16xf32, #tpu.memory_space<vmem>>, vector<1x16xf32>,
      %cst_74 = arith.constant 0.000000e+00 : f32
      %122 = vector.broadcast %cst_74 : f32 to vector<1x16xf32>
      %c0_75 = arith.constant 0 : index
      %c0_76 = arith.constant 0 : index
      %123 = vector.load %arg11[%c0_75, %c0_76] : memref<1x16xf32, #tpu.memory_space<vmem>>, vector<1x16xf32>
      tpu.vector_store %arg11[%c0_75, %c0_76], %122 {strides = array<i32>} : memref<1x16xf32, #tpu.memory_space<vmem>>, vector<1x16xf32>,
      %cst_77 = arith.constant 0.000000e+00 : f32
      %124 = vector.broadcast %cst_77 : f32 to vector<1x16xf32>
      %c0_78 = arith.constant 0 : index
      %c0_79 = arith.constant 0 : index
      %125 = vector.load %arg12[%c0_78, %c0_79] : memref<1x16xf32, #tpu.memory_space<vmem>>, vector<1x16xf32>
      tpu.vector_store %arg12[%c0_78, %c0_79], %124 {strides = array<i32>} : memref<1x16xf32, #tpu.memory_space<vmem>>, vector<1x16xf32>,
    } else {
    }
    %c0 = arith.constant 0 : index
    %c0_2 = arith.constant 0 : index
    %c0_3 = arith.constant 0 : index
    %c0_4 = arith.constant 0 : index
    %5 = vector.load %arg2[%c0, %c0_2, %c0_3, %c0_4] : memref<1x1x16x16xf32, #tpu.memory_space<vmem>>, vector<1x1x16x16xf32>
    %6 = vector.shape_cast %5 : vector<1x1x16x16xf32> to vector<16x16xf32>
    %c0_5 = arith.constant 0 : index
    %c0_6 = arith.constant 0 : index
    %c0_7 = arith.constant 0 : index
    %c0_8 = arith.constant 0 : index
    %7 = vector.load %arg3[%c0_5, %c0_6, %c0_7, %c0_8] : memref<1x1x16x16xf32, #tpu.memory_space<vmem>>, vector<1x1x16x16xf32>
    %8 = vector.shape_cast %7 : vector<1x1x16x16xf32> to vector<16x16xf32>
    %c0_9 = arith.constant 0 : index
    %c0_10 = arith.constant 0 : index
    %c0_11 = arith.constant 0 : index
    %c0_12 = arith.constant 0 : index
    %9 = vector.load %arg4[%c0_9, %c0_10, %c0_11, %c0_12] : memref<1x1x16x16xf32, #tpu.memory_space<vmem>>, vector<1x1x16x16xf32>
    %10 = vector.shape_cast %9 : vector<1x1x16x16xf32> to vector<16x16xf32>
    %c0_13 = arith.constant 0 : index
    %c0_14 = arith.constant 0 : index
    %c0_15 = arith.constant 0 : index
    %c0_16 = arith.constant 0 : index
    %11 = vector.load %arg5[%c0_13, %c0_14, %c0_15, %c0_16] : memref<1x1x16x16xf32, #tpu.memory_space<vmem>>, vector<1x1x16x16xf32>
    %12 = vector.shape_cast %11 : vector<1x1x16x16xf32> to vector<16x16xf32>
    %c0_17 = arith.constant 0 : index
    %c0_18 = arith.constant 0 : index
    %c0_19 = arith.constant 0 : index
    %c0_20 = arith.constant 0 : index
    %13 = vector.load %arg6[%c0_17, %c0_18, %c0_19, %c0_20] : memref<1x1x16x16xf32, #tpu.memory_space<vmem>>, vector<1x1x16x16xf32>
    %14 = vector.shape_cast %13 : vector<1x1x16x16xf32> to vector<16x16xf32>
    %c0_21 = arith.constant 0 : index
    %c0_22 = arith.constant 0 : index
    %c0_23 = arith.constant 0 : index
    %c0_24 = arith.constant 0 : index
    %15 = vector.load %arg7[%c0_21, %c0_22, %c0_23, %c0_24] : memref<1x3x16x16xf32, #tpu.memory_space<vmem>>, vector<1x1x16x16xf32>
    %16 = vector.shape_cast %15 : vector<1x1x16x16xf32> to vector<16x16xf32>
    %c0_25 = arith.constant 0 : index
    %c1 = arith.constant 1 : index
    %c0_26 = arith.constant 0 : index
    %c0_27 = arith.constant 0 : index
    %17 = vector.load %arg7[%c0_25, %c1, %c0_26, %c0_27] : memref<1x3x16x16xf32, #tpu.memory_space<vmem>>, vector<1x1x16x16xf32>
    %18 = vector.shape_cast %17 : vector<1x1x16x16xf32> to vector<16x16xf32>
    %c0_28 = arith.constant 0 : index
    %c2 = arith.constant 2 : index
    %c0_29 = arith.constant 0 : index
    %c0_30 = arith.constant 0 : index
    %19 = vector.load %arg7[%c0_28, %c2, %c0_29, %c0_30] : memref<1x3x16x16xf32, #tpu.memory_space<vmem>>, vector<1x1x16x16xf32>
    %20 = vector.shape_cast %19 : vector<1x1x16x16xf32> to vector<16x16xf32>
    %21 = arith.subf %6, %12 : vector<16x16xf32>
    %22 = arith.subf %8, %12 : vector<16x16xf32>
    %23 = arith.subf %10, %12 : vector<16x16xf32>
    %24 = arith.mulf %21, %21 : vector<16x16xf32>
    %25 = arith.mulf %22, %22 : vector<16x16xf32>
    %cst = arith.constant 5.000000e-01 : f32
    %26 = vector.broadcast %cst : f32 to vector<16x16xf32>
    %27 = arith.mulf %26, %25 : vector<16x16xf32>
    %28 = arith.addf %24, %27 : vector<16x16xf32>
    %29 = arith.mulf %23, %23 : vector<16x16xf32>
    %cst_31 = arith.constant 5.000000e-01 : f32
    %30 = vector.broadcast %cst_31 : f32 to vector<16x16xf32>
    %31 = arith.mulf %30, %29 : vector<16x16xf32>
    %32 = arith.addf %28, %31 : vector<16x16xf32>
    %33 = arith.mulf %32, %14 : vector<16x16xf32>
    %c0_32 = arith.constant 0 : index
    %c0_33 = arith.constant 0 : index
    %34 = vector.load %arg10[%c0_32, %c0_33] : memref<1x16xf32, #tpu.memory_space<vmem>>, vector<1x16xf32>
    %cst_34 = arith.constant dense<0.000000e+00> : vector<16xf32>
    %35 = vector.multi_reduction <add>, %33, %cst_34 [0] : vector<16x16xf32> to vector<16xf32>
    %36 = vector.shape_cast %35 : vector<16xf32> to vector<1x16xf32>
    %37 = arith.addf %34, %36 : vector<1x16xf32>
    %c0_35 = arith.constant 0 : index
    %c0_36 = arith.constant 0 : index
    %38 = vector.load %arg10[%c0_35, %c0_36] : memref<1x16xf32, #tpu.memory_space<vmem>>, vector<1x16xf32>
    tpu.vector_store %arg10[%c0_35, %c0_36], %37 {strides = array<i32>} : memref<1x16xf32, #tpu.memory_space<vmem>>, vector<1x16xf32>,
    %c0_37 = arith.constant 0 : index
    %c0_38 = arith.constant 0 : index
    %39 = vector.load %arg9[%c0_37, %c0_38] : memref<1x16xf32, #tpu.memory_space<vmem>>, vector<1x16xf32>
    %cst_39 = arith.constant dense<0.000000e+00> : vector<16xf32>
    %40 = vector.multi_reduction <add>, %14, %cst_39 [0] : vector<16x16xf32> to vector<16xf32>
    %41 = vector.shape_cast %40 : vector<16xf32> to vector<1x16xf32>
    %42 = arith.addf %39, %41 : vector<1x16xf32>
    %c0_40 = arith.constant 0 : index
    %c0_41 = arith.constant 0 : index
    %43 = vector.load %arg9[%c0_40, %c0_41] : memref<1x16xf32, #tpu.memory_space<vmem>>, vector<1x16xf32>
    tpu.vector_store %arg9[%c0_40, %c0_41], %42 {strides = array<i32>} : memref<1x16xf32, #tpu.memory_space<vmem>>, vector<1x16xf32>,
    %44 = vector.extract_strided_slice %6 {offsets = [0, 0], sizes = [16, 15], strides = [1, 1]} : vector<16x16xf32> to vector<16x15xf32>
    %45 = vector.extract_strided_slice %6 {offsets = [0, 1], sizes = [16, 15], strides = [1, 1]} : vector<16x16xf32> to vector<16x15xf32>
    %46 = arith.subf %44, %45 : vector<16x15xf32>
    %47 = math.absf %46 : vector<16x15xf32>
    %48 = vector.extract_strided_slice %16 {offsets = [0, 0], sizes = [16, 15], strides = [1, 1]} : vector<16x16xf32> to vector<16x15xf32>
    %49 = vector.extract_strided_slice %16 {offsets = [0, 1], sizes = [16, 15], strides = [1, 1]} : vector<16x16xf32> to vector<16x15xf32>
    %50 = arith.subf %48, %49 : vector<16x15xf32>
    %51 = math.absf %50 : vector<16x15xf32>
    %52 = vector.extract_strided_slice %18 {offsets = [0, 0], sizes = [16, 15], strides = [1, 1]} : vector<16x16xf32> to vector<16x15xf32>
    %53 = vector.extract_strided_slice %18 {offsets = [0, 1], sizes = [16, 15], strides = [1, 1]} : vector<16x16xf32> to vector<16x15xf32>
    %54 = arith.subf %52, %53 : vector<16x15xf32>
    %55 = math.absf %54 : vector<16x15xf32>
    %56 = arith.addf %51, %55 : vector<16x15xf32>
    %57 = vector.extract_strided_slice %20 {offsets = [0, 0], sizes = [16, 15], strides = [1, 1]} : vector<16x16xf32> to vector<16x15xf32>
    %58 = vector.extract_strided_slice %20 {offsets = [0, 1], sizes = [16, 15], strides = [1, 1]} : vector<16x16xf32> to vector<16x15xf32>
    %59 = arith.subf %57, %58 : vector<16x15xf32>
    %60 = math.absf %59 : vector<16x15xf32>
    %61 = arith.addf %56, %60 : vector<16x15xf32>
    %cst_42 = arith.constant 0.000000e+00 : f32
    %62 = vector.broadcast %cst_42 : f32 to vector<16x15xf32>
    %63 = arith.subf %62, %61 : vector<16x15xf32>
    %cst_43 = arith.constant 0.333333343 : f32
    %64 = vector.broadcast %cst_43 : f32 to vector<16x15xf32>
    %65 = arith.mulf %63, %64 : vector<16x15xf32>
    %66 = math.exp %65 : vector<16x15xf32>
    %c0_44 = arith.constant 0 : index
    %c0_45 = arith.constant 0 : index
    %67 = vector.load %arg11[%c0_44, %c0_45] : memref<1x16xf32, #tpu.memory_space<vmem>>, vector<1x15xf32>
    %68 = arith.mulf %47, %66 : vector<16x15xf32>
    %cst_46 = arith.constant dense<0.000000e+00> : vector<15xf32>
    %69 = vector.multi_reduction <add>, %68, %cst_46 [0] : vector<16x15xf32> to vector<15xf32>
    %70 = vector.shape_cast %69 : vector<15xf32> to vector<1x15xf32>
    %71 = arith.addf %67, %70 : vector<1x15xf32>
    %c0_47 = arith.constant 0 : index
    %c0_48 = arith.constant 0 : index
    %72 = vector.load %arg11[%c0_47, %c0_48] : memref<1x16xf32, #tpu.memory_space<vmem>>, vector<1x15xf32>
    tpu.vector_store %arg11[%c0_47, %c0_48], %71 {strides = array<i32>} : memref<1x16xf32, #tpu.memory_space<vmem>>, vector<1x15xf32>,
    %73 = vector.extract_strided_slice %6 {offsets = [0, 0], sizes = [15, 16], strides = [1, 1]} : vector<16x16xf32> to vector<15x16xf32>
    %74 = vector.extract_strided_slice %6 {offsets = [1, 0], sizes = [15, 16], strides = [1, 1]} : vector<16x16xf32> to vector<15x16xf32>
    %75 = arith.subf %73, %74 : vector<15x16xf32>
    %76 = math.absf %75 : vector<15x16xf32>
    %77 = vector.extract_strided_slice %16 {offsets = [0, 0], sizes = [15, 16], strides = [1, 1]} : vector<16x16xf32> to vector<15x16xf32>
    %78 = vector.extract_strided_slice %16 {offsets = [1, 0], sizes = [15, 16], strides = [1, 1]} : vector<16x16xf32> to vector<15x16xf32>
    %79 = arith.subf %77, %78 : vector<15x16xf32>
    %80 = math.absf %79 : vector<15x16xf32>
    %81 = vector.extract_strided_slice %18 {offsets = [0, 0], sizes = [15, 16], strides = [1, 1]} : vector<16x16xf32> to vector<15x16xf32>
    %82 = vector.extract_strided_slice %18 {offsets = [1, 0], sizes = [15, 16], strides = [1, 1]} : vector<16x16xf32> to vector<15x16xf32>
    %83 = arith.subf %81, %82 : vector<15x16xf32>
    %84 = math.absf %83 : vector<15x16xf32>
    %85 = arith.addf %80, %84 : vector<15x16xf32>
    %86 = vector.extract_strided_slice %20 {offsets = [0, 0], sizes = [15, 16], strides = [1, 1]} : vector<16x16xf32> to vector<15x16xf32>
    %87 = vector.extract_strided_slice %20 {offsets = [1, 0], sizes = [15, 16], strides = [1, 1]} : vector<16x16xf32> to vector<15x16xf32>
    %88 = arith.subf %86, %87 : vector<15x16xf32>
    %89 = math.absf %88 : vector<15x16xf32>
    %90 = arith.addf %85, %89 : vector<15x16xf32>
    %cst_49 = arith.constant 0.000000e+00 : f32
    %91 = vector.broadcast %cst_49 : f32 to vector<15x16xf32>
    %92 = arith.subf %91, %90 : vector<15x16xf32>
    %cst_50 = arith.constant 0.333333343 : f32
    %93 = vector.broadcast %cst_50 : f32 to vector<15x16xf32>
    %94 = arith.mulf %92, %93 : vector<15x16xf32>
    %95 = math.exp %94 : vector<15x16xf32>
    %c0_51 = arith.constant 0 : index
    %c0_52 = arith.constant 0 : index
    %96 = vector.load %arg12[%c0_51, %c0_52] : memref<1x16xf32, #tpu.memory_space<vmem>>, vector<1x16xf32>
    %97 = arith.mulf %76, %95 : vector<15x16xf32>
    %cst_53 = arith.constant dense<0.000000e+00> : vector<16xf32>
    %98 = vector.multi_reduction <add>, %97, %cst_53 [0] : vector<15x16xf32> to vector<16xf32>
    %99 = vector.shape_cast %98 : vector<16xf32> to vector<1x16xf32>
    %100 = arith.addf %96, %99 : vector<1x16xf32>
    %c0_54 = arith.constant 0 : index
    %c0_55 = arith.constant 0 : index
    %101 = vector.load %arg12[%c0_54, %c0_55] : memref<1x16xf32, #tpu.memory_space<vmem>>, vector<1x16xf32>
    tpu.vector_store %arg12[%c0_54, %c0_55], %100 {strides = array<i32>} : memref<1x16xf32, #tpu.memory_space<vmem>>, vector<1x16xf32>,
    %c0_i32_56 = arith.constant 0 : i32
    %102 = arith.cmpi sgt, %arg1, %c0_i32_56 : i32
    %103 = arith.extui %102 : i1 to i32
    %c0_i32_57 = arith.constant 0 : i32
    %104 = arith.cmpi ne, %103, %c0_i32_57 : i32
    scf.if %104 {
      %c0_68 = arith.constant 0 : index
      %c0_69 = arith.constant 0 : index
      %118 = vector.load %arg13[%c0_68, %c0_69] : memref<1x16xf32, #tpu.memory_space<vmem>>, vector<1x16xf32>
      %119 = vector.extract_strided_slice %6 {offsets = [0, 0], sizes = [1, 16], strides = [1, 1]} : vector<16x16xf32> to vector<1x16xf32>
      %120 = arith.subf %118, %119 : vector<1x16xf32>
      %121 = math.absf %120 : vector<1x16xf32>
      %c0_70 = arith.constant 0 : index
      %c0_71 = arith.constant 0 : index
      %122 = vector.load %arg14[%c0_70, %c0_71] : memref<3x16xf32, #tpu.memory_space<vmem>>, vector<1x16xf32>
      %123 = vector.extract_strided_slice %16 {offsets = [0, 0], sizes = [1, 16], strides = [1, 1]} : vector<16x16xf32> to vector<1x16xf32>
      %124 = arith.subf %122, %123 : vector<1x16xf32>
      %125 = math.absf %124 : vector<1x16xf32>
      %c1_72 = arith.constant 1 : index
      %c0_73 = arith.constant 0 : index
      %126 = vector.load %arg14[%c1_72, %c0_73] : memref<3x16xf32, #tpu.memory_space<vmem>>, vector<1x16xf32>
      %127 = vector.extract_strided_slice %18 {offsets = [0, 0], sizes = [1, 16], strides = [1, 1]} : vector<16x16xf32> to vector<1x16xf32>
      %128 = arith.subf %126, %127 : vector<1x16xf32>
      %129 = math.absf %128 : vector<1x16xf32>
      %130 = arith.addf %125, %129 : vector<1x16xf32>
      %c2_74 = arith.constant 2 : index
      %c0_75 = arith.constant 0 : index
      %131 = vector.load %arg14[%c2_74, %c0_75] : memref<3x16xf32, #tpu.memory_space<vmem>>, vector<1x16xf32>
      %132 = vector.extract_strided_slice %20 {offsets = [0, 0], sizes = [1, 16], strides = [1, 1]} : vector<16x16xf32> to vector<1x16xf32>
      %133 = arith.subf %131, %132 : vector<1x16xf32>
      %134 = math.absf %133 : vector<1x16xf32>
      %135 = arith.addf %130, %134 : vector<1x16xf32>
      %cst_76 = arith.constant 0.000000e+00 : f32
      %136 = vector.broadcast %cst_76 : f32 to vector<1x16xf32>
      %137 = arith.subf %136, %135 : vector<1x16xf32>
      %cst_77 = arith.constant 0.333333343 : f32
      %138 = vector.broadcast %cst_77 : f32 to vector<1x16xf32>
      %139 = arith.mulf %137, %138 : vector<1x16xf32>
      %140 = math.exp %139 : vector<1x16xf32>
      %c0_78 = arith.constant 0 : index
      %c0_79 = arith.constant 0 : index
      %141 = vector.load %arg12[%c0_78, %c0_79] : memref<1x16xf32, #tpu.memory_space<vmem>>, vector<1x16xf32>
      %142 = arith.mulf %121, %140 : vector<1x16xf32>
      %143 = arith.addf %141, %142 : vector<1x16xf32>
      %c0_80 = arith.constant 0 : index
      %c0_81 = arith.constant 0 : index
      %144 = vector.load %arg12[%c0_80, %c0_81] : memref<1x16xf32, #tpu.memory_space<vmem>>, vector<1x16xf32>
      tpu.vector_store %arg12[%c0_80, %c0_81], %143 {strides = array<i32>} : memref<1x16xf32, #tpu.memory_space<vmem>>, vector<1x16xf32>,
    } else {
    }
    %105 = vector.extract_strided_slice %6 {offsets = [15, 0], sizes = [1, 16], strides = [1, 1]} : vector<16x16xf32> to vector<1x16xf32>
    %c0_58 = arith.constant 0 : index
    %c0_59 = arith.constant 0 : index
    %106 = vector.load %arg13[%c0_58, %c0_59] : memref<1x16xf32, #tpu.memory_space<vmem>>, vector<1x16xf32>
    tpu.vector_store %arg13[%c0_58, %c0_59], %105 {strides = array<i32>} : memref<1x16xf32, #tpu.memory_space<vmem>>, vector<1x16xf32>,
    %107 = vector.extract_strided_slice %16 {offsets = [15, 0], sizes = [1, 16], strides = [1, 1]} : vector<16x16xf32> to vector<1x16xf32>
    %c0_60 = arith.constant 0 : index
    %c0_61 = arith.constant 0 : index
    %108 = vector.load %arg14[%c0_60, %c0_61] : memref<3x16xf32, #tpu.memory_space<vmem>>, vector<1x16xf32>
    tpu.vector_store %arg14[%c0_60, %c0_61], %107 {strides = array<i32>} : memref<3x16xf32, #tpu.memory_space<vmem>>, vector<1x16xf32>,
    %109 = vector.extract_strided_slice %18 {offsets = [15, 0], sizes = [1, 16], strides = [1, 1]} : vector<16x16xf32> to vector<1x16xf32>
    %c1_62 = arith.constant 1 : index
    %c0_63 = arith.constant 0 : index
    %110 = vector.load %arg14[%c1_62, %c0_63] : memref<3x16xf32, #tpu.memory_space<vmem>>, vector<1x16xf32>
    tpu.vector_store %arg14[%c1_62, %c0_63], %109 {strides = array<i32>} : memref<3x16xf32, #tpu.memory_space<vmem>>, vector<1x16xf32>,
    %111 = vector.extract_strided_slice %20 {offsets = [15, 0], sizes = [1, 16], strides = [1, 1]} : vector<16x16xf32> to vector<1x16xf32>
    %c2_64 = arith.constant 2 : index
    %c0_65 = arith.constant 0 : index
    %112 = vector.load %arg14[%c2_64, %c0_65] : memref<3x16xf32, #tpu.memory_space<vmem>>, vector<1x16xf32>
    tpu.vector_store %arg14[%c2_64, %c0_65], %111 {strides = array<i32>} : memref<3x16xf32, #tpu.memory_space<vmem>>, vector<1x16xf32>,
    %c1_i32 = arith.constant 1 : i32
    %113 = arith.cmpi eq, %arg0, %c1_i32 : i32
    %c0_i32_66 = arith.constant 0 : i32
    %114 = arith.cmpi eq, %arg1, %c0_i32_66 : i32
    %115 = arith.andi %113, %114 : i1
    %116 = arith.extui %115 : i1 to i32
    %c0_i32_67 = arith.constant 0 : i32
    %117 = arith.cmpi ne, %116, %c0_i32_67 : i32
    scf.if %117 {
      %c0_68 = arith.constant 0 : index
      %c0_69 = arith.constant 0 : index
      %118 = vector.load %arg9[%c0_68, %c0_69] : memref<1x16xf32, #tpu.memory_space<vmem>>, vector<1x16xf32>
      %119 = vector.shape_cast %118 : vector<1x16xf32> to vector<1x1x16xf32>
      %cst_70 = arith.constant dense<0.000000e+00> : vector<1xf32>
      %120 = vector.multi_reduction <add>, %119, %cst_70 [1, 2] : vector<1x1x16xf32> to vector<1xf32>
      %121 = vector.shape_cast %120 : vector<1xf32> to vector<1x1x1xf32>
      %122 = vector.extract %121[0, 0, 0] : f32 from vector<1x1x1xf32>
      %c0_71 = arith.constant 0 : index
      %c0_72 = arith.constant 0 : index
      %123 = vector.load %arg10[%c0_71, %c0_72] : memref<1x16xf32, #tpu.memory_space<vmem>>, vector<1x16xf32>
      %124 = vector.shape_cast %123 : vector<1x16xf32> to vector<1x1x16xf32>
      %cst_73 = arith.constant dense<0.000000e+00> : vector<1xf32>
      %125 = vector.multi_reduction <add>, %124, %cst_73 [1, 2] : vector<1x1x16xf32> to vector<1xf32>
      %126 = vector.shape_cast %125 : vector<1xf32> to vector<1x1x1xf32>
      %127 = vector.extract %126[0, 0, 0] : f32 from vector<1x1x1xf32>
      %128 = arith.divf %127, %122 : f32
      %c0_74 = arith.constant 0 : index
      %c0_75 = arith.constant 0 : index
      %129 = vector.load %arg11[%c0_74, %c0_75] : memref<1x16xf32, #tpu.memory_space<vmem>>, vector<1x16xf32>
      %130 = vector.shape_cast %129 : vector<1x16xf32> to vector<1x1x16xf32>
      %cst_76 = arith.constant dense<0.000000e+00> : vector<1xf32>
      %131 = vector.multi_reduction <add>, %130, %cst_76 [1, 2] : vector<1x1x16xf32> to vector<1xf32>
      %132 = vector.shape_cast %131 : vector<1xf32> to vector<1x1x1xf32>
      %133 = vector.extract %132[0, 0, 0] : f32 from vector<1x1x1xf32>
      %cst_77 = arith.constant 0.00208333344 : f32
      %134 = arith.mulf %133, %cst_77 : f32
      %c0_78 = arith.constant 0 : index
      %c0_79 = arith.constant 0 : index
      %135 = vector.load %arg12[%c0_78, %c0_79] : memref<1x16xf32, #tpu.memory_space<vmem>>, vector<1x16xf32>
      %136 = vector.shape_cast %135 : vector<1x16xf32> to vector<1x1x16xf32>
      %cst_80 = arith.constant dense<0.000000e+00> : vector<1xf32>
      %137 = vector.multi_reduction <add>, %136, %cst_80 [1, 2] : vector<1x1x16xf32> to vector<1xf32>
      %138 = vector.shape_cast %137 : vector<1xf32> to vector<1x1x1xf32>
      %139 = vector.extract %138[0, 0, 0] : f32 from vector<1x1x1xf32>
      %cst_81 = arith.constant 0.00208333344 : f32
      %140 = arith.mulf %139, %cst_81 : f32
      %141 = arith.addf %134, %140 : f32
      %cst_82 = arith.constant 5.000000e-03 : f32
      %142 = arith.mulf %cst_82, %141 : f32
      %143 = arith.addf %128, %142 : f32
      %c0_83 = arith.constant 0 : index
      %c0_84 = arith.constant 0 : index
      %144 = memref.load %arg8[%c0_83, %c0_84] : memref<1x1xf32, #tpu.memory_space<smem>>
      memref.store %143, %arg8[%c0_83, %c0_84] : memref<1x1xf32, #tpu.memory_space<smem>>
    } else {
    }
    return
  }
  func.func @transform_0(%arg0: i32, %arg1: i32) -> (i32, i32, i32, i32) {
    %c0_i32 = arith.constant 0 : i32
    %c0_i32_0 = arith.constant 0 : i32
    %c0_i32_1 = arith.constant 0 : i32
    return %arg0, %c0_i32, %arg1, %c0_i32_0 : i32, i32, i32, i32
  }
  func.func @transform_1(%arg0: i32, %arg1: i32) -> (i32, i32, i32, i32) {
    %c0_i32 = arith.constant 0 : i32
    %c0_i32_0 = arith.constant 0 : i32
    %c0_i32_1 = arith.constant 0 : i32
    return %arg0, %c0_i32, %arg1, %c0_i32_0 : i32, i32, i32, i32
  }
  func.func @transform_2(%arg0: i32, %arg1: i32) -> (i32, i32, i32, i32) {
    %c0_i32 = arith.constant 0 : i32
    %c0_i32_0 = arith.constant 0 : i32
    %c0_i32_1 = arith.constant 0 : i32
    return %arg0, %c0_i32, %arg1, %c0_i32_0 : i32, i32, i32, i32
  }
  func.func @transform_3(%arg0: i32, %arg1: i32) -> (i32, i32, i32, i32) {
    %c0_i32 = arith.constant 0 : i32
    %c0_i32_0 = arith.constant 0 : i32
    %c0_i32_1 = arith.constant 0 : i32
    return %arg0, %c0_i32, %arg1, %c0_i32_0 : i32, i32, i32, i32
  }
  func.func @transform_4(%arg0: i32, %arg1: i32) -> (i32, i32, i32, i32) {
    %c0_i32 = arith.constant 0 : i32
    %c0_i32_0 = arith.constant 0 : i32
    %c0_i32_1 = arith.constant 0 : i32
    return %arg0, %c0_i32, %arg1, %c0_i32_0 : i32, i32, i32, i32
  }
  func.func @transform_5(%arg0: i32, %arg1: i32) -> (i32, i32, i32, i32) {
    %c0_i32 = arith.constant 0 : i32
    %c0_i32_0 = arith.constant 0 : i32
    %c0_i32_1 = arith.constant 0 : i32
    return %arg0, %c0_i32, %arg1, %c0_i32_0 : i32, i32, i32, i32
  }
  func.func @transform_6(%arg0: i32, %arg1: i32) -> (i32, i32) {
    %c0_i32 = arith.constant 0 : i32
    %c0_i32_0 = arith.constant 0 : i32
    %c0_i32_1 = arith.constant 0 : i32
    return %c0_i32, %c0_i32_0 : i32, i32
  }
}

</mosaic_0001>

<llo_original>
// kernel: tpu_custom_call.1
$region0: #{tpu_custom_call.1}
  #allocation0 [shape = 'u32[]', space=smem, size = 0x4, offset = 0x4, fixed_abs, tag = 'smem constant byte address 0x4 - core index']
  #allocation1 [shape = 'u32[72,128]{1,0:T(1,128)}', space=vmem, size = 0x9000, scoped, tag = 'internal scratch']
  #allocation2 [shape = 'f32[1,16]{1,0:T(1,128)}', space=vmem, size = 0x200, scoped, tag = 'scratch operand']
  #allocation3 [shape = 'f32[1,16]{1,0:T(1,128)}', space=vmem, size = 0x200, scoped, tag = 'scratch operand']
  #allocation4 [shape = 'f32[1,16]{1,0:T(1,128)}', space=vmem, size = 0x200, scoped, tag = 'scratch operand']
  #allocation5 [shape = 'f32[1,16]{1,0:T(1,128)}', space=vmem, size = 0x200, scoped, tag = 'scratch operand']
  #allocation6 [shape = 'f32[1,16]{1,0:T(1,128)}', space=vmem, size = 0x200, scoped, tag = 'scratch operand']
  #allocation7 [shape = 'f32[3,16]{1,0:T(4,128)}', space=vmem, size = 0x800, scoped, tag = 'scratch operand']
  %s0 = inlined_call_operand.hbm [shape: f32[2,1,16,16], index: 0, kind: input, shape index: {}]
  %s1 = inlined_call_operand.hbm [shape: f32[2,1,16,16], index: 1, kind: input, shape index: {}]
  %s2 = inlined_call_operand.hbm [shape: f32[2,1,16,16], index: 2, kind: input, shape index: {}]
  %s3 = inlined_call_operand.hbm [shape: f32[2,1,16,16], index: 3, kind: input, shape index: {}]
  %s4 = inlined_call_operand.hbm [shape: f32[2,1,16,16], index: 4, kind: input, shape index: {}]
  %s5 = inlined_call_operand.hbm [shape: f32[2,3,16,16], index: 5, kind: input, shape index: {}]
  %s6 = inlined_call_operand.hbm [shape: f32[1,1], index: 6, kind: output, shape index: {}]
  %s7 = sld [smem:[#allocation0]]
  $region93: #{tpu_custom_call.1} parent=0
    _
  %s9 = ssub.s32 1, %s7
  %s10 = scalar_select 0, %s9, %s7
  $region1: #{tpu_custom_call.1} parent=0
    #allocation8 [shape = 'u8[16384]{0}', space=vmem, size = 0x4000, scoped, tag = 'input window, operand 0']
    #allocation9 [shape = 's32[2]{0}', space=sflag, size = 0x8, scoped, tag = 'scoped memory for tpu_custom_call.1']
    #allocation10 [shape = 's32[2]{0}', space=sflag, size = 0x8, scoped, tag = 'scoped memory for tpu_custom_call.1']
    #allocation11 [shape = 'u8[16384]{0}', space=vmem, size = 0x4000, scoped, tag = 'input window, operand 1']
    #allocation12 [shape = 's32[2]{0}', space=sflag, size = 0x8, scoped, tag = 'scoped memory for tpu_custom_call.1']
    #allocation13 [shape = 'u8[16384]{0}', space=vmem, size = 0x4000, scoped, tag = 'input window, operand 2']
    #allocation14 [shape = 'u8[16384]{0}', space=vmem, size = 0x4000, scoped, tag = 'input window, operand 3']
    #allocation15 [shape = 's32[2]{0}', space=sflag, size = 0x8, scoped, tag = 'scoped memory for tpu_custom_call.1']
    #allocation16 [shape = 'u8[16384]{0}', space=vmem, size = 0x4000, scoped, tag = 'input window, operand 4']
    #allocation17 [shape = 'u8[49152]{0}', space=vmem, size = 0xc000, scoped, tag = 'input window, operand 5']
    #allocation18 [shape = 's32[2]{0}', space=sflag, size = 0x8, scoped, tag = 'scoped memory for tpu_custom_call.1']
    #allocation19 [shape = 'u8[512]{0}', space=smem, size = 0x200, scoped, tag = 'output window, operand 0, single buffered']
    %11 = vsyncpa [#allocation9], 0
    %s12 = scalar_lea.sflag [#allocation9], 1
    %13 = vsyncpa %s12, 0
    %14 = vsyncpa [#allocation12], 0
    %s15 = scalar_lea.sflag [#allocation12], 1
    %16 = vsyncpa %s15, 0
    %17 = vsyncpa [#allocation15], 0
    %s18 = scalar_lea.sflag [#allocation15], 1
    %19 = vsyncpa %s18, 0
    %20 = vsyncpa [#allocation18], 0
    %s21 = scalar_lea.sflag [#allocation18], 1
    %22 = vsyncpa %s21, 0
    %23 = vsyncpa [#allocation10], 0
    loop: start=0, step=1, limit=4
    $region2: #{tpu_custom_call.1} parent=1 // loop_pre_header
      _
    $region3: #{tpu_custom_call.1} parent=1 // loop_header
      %s25 = sphi 0, %s29
      %p26 = scmp.ge.s32.totalorder %s25, 4
      %s32 = sphi 0, %s44
      %s33 = sphi 0, %s40
      %s34 = sphi 0, %s32
      %s35 = sphi 0, %s33
      %s36 = sphi 0, %s34
      %s37 = sphi 0, %s35
      %s49 = sphi 0, %s51
      %s52 = sphi 0, %s49
      %s53 = sphi 0, %s52
      %s69 = sphi 0, %s53
      %s77 = sphi 0, %s79
      %s80 = sphi 0, %s77
      %s81 = sphi 0, %s80
      %s97 = sphi 0, %s81
      %s105 = sphi 0, %s107
      %s108 = sphi 0, %s105
      %s109 = sphi 0, %s108
      %s125 = sphi 0, %s109
      %s133 = sphi 0, %s135
      %s136 = sphi 0, %s133
      %s137 = sphi 0, %s136
      %s153 = sphi 0, %s137
      %s161 = sphi 0, %s163
      %s164 = sphi 0, %s161
      %s165 = sphi 0, %s164
      %s181 = sphi 0, %s165
      %s189 = sphi 0, %s191
      %s192 = sphi 0, %s189
      %s193 = sphi 0, %s192
      %s209 = sphi 0, %s193
      %s213 = sphi 0, %s213
      %s215 = sphi 0, %s213
      %s216 = sphi 0, %s215
      %s230 = sphi 0, %s216
    $region4: #{tpu_custom_call.1} parent=1 // loop_header_branch
      %28 = sbr.rel (%p26) target = $region8
    $region5: #{tpu_custom_call.1} parent=1 // loop_body
      %s30 = ssub.s32 %s25, 1
      %s31 = ssub.s32 %s25, 2
      %s38 = sadd.s32 1, %s33
      %p39 = scmp.ge.s32.totalorder %s38, 1
      %s40 = scalar_select %p39, 0, %s38
      %s41 = sadd.s32 1, %s32
      %s42 = scalar_select %p39, %s41, %s32
      %p43 = scmp.ge.s32.totalorder %s42, 2
      %s44 = scalar_select %p43, 0, %s42
      %s45 = ssub.s32 %s32, %s44
      %s46 = ssub.s32 %s33, %s40
      %s47 = sor.u32 %s45, %s46
      %p48 = scmp.eq.s32.totalorder %s47, 0
      %s50 = sadd.s32 %s49, 1
      %s51 = scalar_select %p48, %s49, %s50
      %p54 = pneg %p48
      %p55 = scmp.eq.s32.totalorder %s25, 1
      %p56 = por %p54, %p55
      %p57 = scmp.ne.s32.totalorder %s49, %s52
      %p58 = scmp.eq.s32.totalorder %s25, 0
      %p59 = por %p57, %p58
      %p60 = scmp.ne.s32.totalorder %s49, %s52
      %p61 = scmp.eq.s32.totalorder %s30, 1
      %p62 = por %p60, %p61
      %p63 = scmp.ne.s32.totalorder %s52, %s53
      %p64 = scmp.eq.s32.totalorder %s30, 0
      %p65 = por %p63, %p64
      %p66 = scmp.ne.s32.totalorder %s52, %s53
      %p67 = scmp.eq.s32.totalorder %s31, 1
      %p68 = por %p66, %p67
      %p70 = scmp.ne.s32.totalorder %s53, %s69
      %p71 = scmp.eq.s32.totalorder %s31, 0
      %p72 = por %p70, %p71
      %s73 = ssub.s32 %s32, %s44
      %s74 = ssub.s32 %s33, %s40
      %s75 = sor.u32 %s73, %s74
      %p76 = scmp.eq.s32.totalorder %s75, 0
      %s78 = sadd.s32 %s77, 1
      %s79 = scalar_select %p76, %s77, %s78
      %p82 = pneg %p76
      %p83 = scmp.eq.s32.totalorder %s25, 1
      %p84 = por %p82, %p83
      %p85 = scmp.ne.s32.totalorder %s77, %s80
      %p86 = scmp.eq.s32.totalorder %s25, 0
      %p87 = por %p85, %p86
      %p88 = scmp.ne.s32.totalorder %s77, %s80
      %p89 = scmp.eq.s32.totalorder %s30, 1
      %p90 = por %p88, %p89
      %p91 = scmp.ne.s32.totalorder %s80, %s81
      %p92 = scmp.eq.s32.totalorder %s30, 0
      %p93 = por %p91, %p92
      %p94 = scmp.ne.s32.totalorder %s80, %s81
      %p95 = scmp.eq.s32.totalorder %s31, 1
      %p96 = por %p94, %p95
      %p98 = scmp.ne.s32.totalorder %s81, %s97
      %p99 = scmp.eq.s32.totalorder %s31, 0
      %p100 = por %p98, %p99
      %s101 = ssub.s32 %s32, %s44
      %s102 = ssub.s32 %s33, %s40
      %s103 = sor.u32 %s101, %s102
      %p104 = scmp.eq.s32.totalorder %s103, 0
      %s106 = sadd.s32 %s105, 1
      %s107 = scalar_select %p104, %s105, %s106
      %p110 = pneg %p104
      %p111 = scmp.eq.s32.totalorder %s25, 1
      %p112 = por %p110, %p111
      %p113 = scmp.ne.s32.totalorder %s105, %s108
      %p114 = scmp.eq.s32.totalorder %s25, 0
      %p115 = por %p113, %p114
      %p116 = scmp.ne.s32.totalorder %s105, %s108
      %p117 = scmp.eq.s32.totalorder %s30, 1
      %p118 = por %p116, %p117
      %p119 = scmp.ne.s32.totalorder %s108, %s109
      %p120 = scmp.eq.s32.totalorder %s30, 0
      %p121 = por %p119, %p120
      %p122 = scmp.ne.s32.totalorder %s108, %s109
      %p123 = scmp.eq.s32.totalorder %s31, 1
      %p124 = por %p122, %p123
      %p126 = scmp.ne.s32.totalorder %s109, %s125
      %p127 = scmp.eq.s32.totalorder %s31, 0
      %p128 = por %p126, %p127
      %s129 = ssub.s32 %s32, %s44
      %s130 = ssub.s32 %s33, %s40
      %s131 = sor.u32 %s129, %s130
      %p132 = scmp.eq.s32.totalorder %s131, 0
      %s134 = sadd.s32 %s133, 1
      %s135 = scalar_select %p132, %s133, %s134
      %p138 = pneg %p132
      %p139 = scmp.eq.s32.totalorder %s25, 1
      %p140 = por %p138, %p139
      %p141 = scmp.ne.s32.totalorder %s133, %s136
      %p142 = scmp.eq.s32.totalorder %s25, 0
      %p143 = por %p141, %p142
      %p144 = scmp.ne.s32.totalorder %s133, %s136
      %p145 = scmp.eq.s32.totalorder %s30, 1
      %p146 = por %p144, %p145
      %p147 = scmp.ne.s32.totalorder %s136, %s137
      %p148 = scmp.eq.s32.totalorder %s30, 0
      %p149 = por %p147, %p148
      %p150 = scmp.ne.s32.totalorder %s136, %s137
      %p151 = scmp.eq.s32.totalorder %s31, 1
      %p152 = por %p150, %p151
      %p154 = scmp.ne.s32.totalorder %s137, %s153
      %p155 = scmp.eq.s32.totalorder %s31, 0
      %p156 = por %p154, %p155
      %s157 = ssub.s32 %s32, %s44
      %s158 = ssub.s32 %s33, %s40
      %s159 = sor.u32 %s157, %s158
      %p160 = scmp.eq.s32.totalorder %s159, 0
      %s162 = sadd.s32 %s161, 1
      %s163 = scalar_select %p160, %s161, %s162
      %p166 = pneg %p160
      %p167 = scmp.eq.s32.totalorder %s25, 1
      %p168 = por %p166, %p167
      %p169 = scmp.ne.s32.totalorder %s161, %s164
      %p170 = scmp.eq.s32.totalorder %s25, 0
      %p171 = por %p169, %p170
      %p172 = scmp.ne.s32.totalorder %s161, %s164
      %p173 = scmp.eq.s32.totalorder %s30, 1
      %p174 = por %p172, %p173
      %p175 = scmp.ne.s32.totalorder %s164, %s165
      %p176 = scmp.eq.s32.totalorder %s30, 0
      %p177 = por %p175, %p176
      %p178 = scmp.ne.s32.totalorder %s164, %s165
      %p179 = scmp.eq.s32.totalorder %s31, 1
      %p180 = por %p178, %p179
      %p182 = scmp.ne.s32.totalorder %s165, %s181
      %p183 = scmp.eq.s32.totalorder %s31, 0
      %p184 = por %p182, %p183
      %s185 = ssub.s32 %s32, %s44
      %s186 = ssub.s32 %s33, %s40
      %s187 = sor.u32 %s185, %s186
      %p188 = scmp.eq.s32.totalorder %s187, 0
      %s190 = sadd.s32 %s189, 1
      %s191 = scalar_select %p188, %s189, %s190
      %p194 = pneg %p188
      %p195 = scmp.eq.s32.totalorder %s25, 1
      %p196 = por %p194, %p195
      %p197 = scmp.ne.s32.totalorder %s189, %s192
      %p198 = scmp.eq.s32.totalorder %s25, 0
      %p199 = por %p197, %p198
      %p200 = scmp.ne.s32.totalorder %s189, %s192
      %p201 = scmp.eq.s32.totalorder %s30, 1
      %p202 = por %p200, %p201
      %p203 = scmp.ne.s32.totalorder %s192, %s193
      %p204 = scmp.eq.s32.totalorder %s30, 0
      %p205 = por %p203, %p204
      %p206 = scmp.ne.s32.totalorder %s192, %s193
      %p207 = scmp.eq.s32.totalorder %s31, 1
      %p208 = por %p206, %p207
      %p210 = scmp.ne.s32.totalorder %s193, %s209
      %p211 = scmp.eq.s32.totalorder %s31, 0
      %p212 = por %p210, %p211
      %s214 = sadd.s32 %s213, 1
      %p217 = scmp.eq.s32.totalorder %s25, 1
      %p218 = scmp.ne.s32.totalorder %s213, %s215
      %p219 = scmp.eq.s32.totalorder %s25, 0
      %p220 = por %p218, %p219
      %p221 = scmp.ne.s32.totalorder %s213, %s215
      %p222 = scmp.eq.s32.totalorder %s30, 1
      %p223 = por %p221, %p222
      %p224 = scmp.ne.s32.totalorder %s215, %s216
      %p225 = scmp.eq.s32.totalorder %s30, 0
      %p226 = por %p224, %p225
      %p227 = scmp.ne.s32.totalorder %s215, %s216
      %p228 = scmp.eq.s32.totalorder %s31, 1
      %p229 = por %p227, %p228
      %p231 = scmp.ne.s32.totalorder %s216, %s230
      %p232 = scmp.eq.s32.totalorder %s31, 0
      %p233 = por %p231, %p232
      %p234 = scmp.le.s32.totalorder 1, %s25
      %p235 = scmp.lt.s32.totalorder %s25, 3
      %p236 = pnand %p234, %p235
      %p237 = pneg %p236
      // Predicated region
      $region9: #{tpu_custom_call.1} parent=5 // pred_check
        _
      $region10: #{tpu_custom_call.1} parent=5 // pred_check_branch
        %239 = sbr.rel (%p236) target = $region12
      $region11: #{tpu_custom_call.1} parent=5 // pred_region
        %s240 = ssub.s32 %s25, 1
      $region12: #{tpu_custom_call.1} parent=5 // pred_fallthru
        _
      %p241 = scmp.lt.s32.totalorder %s25, 2
      // Predicated region
      $region13: #{tpu_custom_call.1} parent=5 // pred_check
        %p242 = pneg %p241
      $region14: #{tpu_custom_call.1} parent=5 // pred_check_branch
        %244 = sbr.rel (%p242) target = $region16
      $region15: #{tpu_custom_call.1} parent=5 // pred_region
        // Predicated region
        $region17: #{tpu_custom_call.1} parent=15 // pred_check
          %p245 = pneg %p59
        $region18: #{tpu_custom_call.1} parent=15 // pred_check_branch
          %247 = sbr.rel (%p245) target = $region20
        $region19: #{tpu_custom_call.1} parent=15 // pred_region
          %s248 = sand.u32 %s49, 1
          %s249 = scalar_lea.sflag [#allocation9], %s248
          %s250 = sand.u32 %s49, 1
          %s251 = smul.addr %s250, 16
          %s252 = scalar_lea.vmem [#allocation8], %s251
          %s253 = smul.u32 2, %s33
          %255 = vsyncadd %s249, 0
          %s256 = smul.addr %s32, 2
          %s257 = sadd.s32 %s253, %s256
          %s258 = smul.addr %s257, 8
          %s259 = scalar_lea.hbm %s0, %s258
          %s260 = sshll.u32 %s259, 4
          %s261 = int_to_ptr.hbm [resolvable:$true] %s260
          %s262 = sshll.u32 %s252, 4
          %s263 = int_to_ptr.vmem [resolvable:$true] %s262
          %268 = dma.hbm_to_vmem [thread:$0]  %s261, 256, %s263, %s249, 128, 128, 8
        $region20: #{tpu_custom_call.1} parent=15 // pred_fallthru
          _
        // Predicated region
        $region21: #{tpu_custom_call.1} parent=15 // pred_check
          %p269 = pneg %p87
        $region22: #{tpu_custom_call.1} parent=15 // pred_check_branch
          %271 = sbr.rel (%p269) target = $region24
        $region23: #{tpu_custom_call.1} parent=15 // pred_region
          %s272 = sand.u32 %s25, 1
          %s273 = scalar_lea.sflag [#allocation12], %s272
          %s274 = sand.u32 %s77, 1
          %s275 = smul.addr %s274, 16
          %s276 = scalar_lea.vmem [#allocation11], %s275
          %s277 = smul.u32 2, %s33
          %279 = vsyncadd %s273, 0
          %s280 = smul.addr %s32, 2
          %s281 = sadd.s32 %s277, %s280
          %s282 = smul.addr %s281, 8
          %s283 = scalar_lea.hbm %s1, %s282
          %s284 = sshll.u32 %s283, 4
          %s285 = int_to_ptr.hbm [resolvable:$true] %s284
          %s286 = sshll.u32 %s276, 4
          %s287 = int_to_ptr.vmem [resolvable:$true] %s286
          %292 = dma.hbm_to_vmem [thread:$0]  %s285, 256, %s287, %s273, 128, 128, 8
        $region24: #{tpu_custom_call.1} parent=15 // pred_fallthru
          _
        // Predicated region
        $region25: #{tpu_custom_call.1} parent=15 // pred_check
          %p293 = pneg %p115
        $region26: #{tpu_custom_call.1} parent=15 // pred_check_branch
          %295 = sbr.rel (%p293) target = $region28
        $region27: #{tpu_custom_call.1} parent=15 // pred_region
          %s296 = sand.u32 %s25, 1
          %s297 = scalar_lea.sflag [#allocation12], %s296
          %s298 = sand.u32 %s105, 1
          %s299 = smul.addr %s298, 16
          %s300 = scalar_lea.vmem [#allocation13], %s299
          %s301 = smul.u32 2, %s33
          %303 = vsyncadd %s297, 0
          %s304 = smul.addr %s32, 2
          %s305 = sadd.s32 %s301, %s304
          %s306 = smul.addr %s305, 8
          %s307 = scalar_lea.hbm %s2, %s306
          %s308 = sshll.u32 %s307, 4
          %s309 = int_to_ptr.hbm [resolvable:$true] %s308
          %s310 = sshll.u32 %s300, 4
          %s311 = int_to_ptr.vmem [resolvable:$true] %s310
          %316 = dma.hbm_to_vmem [thread:$0]  %s309, 256, %s311, %s297, 128, 128, 8
        $region28: #{tpu_custom_call.1} parent=15 // pred_fallthru
          _
        // Predicated region
        $region29: #{tpu_custom_call.1} parent=15 // pred_check
          %p317 = pneg %p143
        $region30: #{tpu_custom_call.1} parent=15 // pred_check_branch
          %319 = sbr.rel (%p317) target = $region32
        $region31: #{tpu_custom_call.1} parent=15 // pred_region
          %s320 = sand.u32 %s25, 1
          %s321 = scalar_lea.sflag [#allocation15], %s320
          %s322 = sand.u32 %s133, 1
          %s323 = smul.addr %s322, 16
          %s324 = scalar_lea.vmem [#allocation14], %s323
          %s325 = smul.u32 2, %s33
          %327 = vsyncadd %s321, 0
          %s328 = smul.addr %s32, 2
          %s329 = sadd.s32 %s325, %s328
          %s330 = smul.addr %s329, 8
          %s331 = scalar_lea.hbm %s3, %s330
          %s332 = sshll.u32 %s331, 4
          %s333 = int_to_ptr.hbm [resolvable:$true] %s332
          %s334 = sshll.u32 %s324, 4
          %s335 = int_to_ptr.vmem [resolvable:$true] %s334
          %340 = dma.hbm_to_vmem [thread:$0]  %s333, 256, %s335, %s321, 128, 128, 8
        $region32: #{tpu_custom_call.1} parent=15 // pred_fallthru
          _
        // Predicated region
        $region33: #{tpu_custom_call.1} parent=15 // pred_check
          %p341 = pneg %p171
        $region34: #{tpu_custom_call.1} parent=15 // pred_check_branch
          %343 = sbr.rel (%p341) target = $region36
        $region35: #{tpu_custom_call.1} parent=15 // pred_region
          %s344 = sand.u32 %s25, 1
          %s345 = scalar_lea.sflag [#allocation15], %s344
          %s346 = sand.u32 %s161, 1
          %s347 = smul.addr %s346, 16
          %s348 = scalar_lea.vmem [#allocation16], %s347
          %s349 = smul.u32 2, %s33
          %351 = vsyncadd %s345, 0
          %s352 = smul.addr %s32, 2
          %s353 = sadd.s32 %s349, %s352
          %s354 = smul.addr %s353, 8
          %s355 = scalar_lea.hbm %s4, %s354
          %s356 = sshll.u32 %s355, 4
          %s357 = int_to_ptr.hbm [resolvable:$true] %s356
          %s358 = sshll.u32 %s348, 4
          %s359 = int_to_ptr.vmem [resolvable:$true] %s358
          %364 = dma.hbm_to_vmem [thread:$0]  %s357, 256, %s359, %s345, 128, 128, 8
        $region36: #{tpu_custom_call.1} parent=15 // pred_fallthru
          _
        // Predicated region
        $region37: #{tpu_custom_call.1} parent=15 // pred_check
          %p365 = pneg %p199
        $region38: #{tpu_custom_call.1} parent=15 // pred_check_branch
          %367 = sbr.rel (%p365) target = $region40
        $region39: #{tpu_custom_call.1} parent=15 // pred_region
          %s368 = sand.u32 %s189, 1
          %s369 = scalar_lea.sflag [#allocation18], %s368
          %s370 = sand.u32 %s189, 1
          %s371 = smul.addr %s370, 48
          %s372 = scalar_lea.vmem [#allocation17], %s371
          %s373 = smul.u32 2, %s33
          %375 = vsyncadd %s369, 0
          %s376 = smul.addr %s32, 6
          %s377 = sadd.s32 %s373, %s376
          %s378 = smul.addr %s377, 8
          %s379 = scalar_lea.hbm %s5, %s378
          %s380 = sshll.u32 %s379, 4
          %s381 = int_to_ptr.hbm [resolvable:$true] %s380
          %s382 = sshll.u32 %s372, 4
          %s383 = int_to_ptr.vmem [resolvable:$true] %s382
          %388 = dma.hbm_to_vmem [thread:$0]  %s381, 768, %s383, %s369, 128, 128, 8
        $region40: #{tpu_custom_call.1} parent=15 // pred_fallthru
          _
      $region16: #{tpu_custom_call.1} parent=5 // pred_fallthru
        _
      %p389 = scmp.le.s32.totalorder 1, %s25
      %p390 = scmp.lt.s32.totalorder %s25, 3
      %p391 = pnand %p389, %p390
      %p392 = pneg %p391
      // Predicated region
      $region41: #{tpu_custom_call.1} parent=5 // pred_check
        _
      $region42: #{tpu_custom_call.1} parent=5 // pred_check_branch
        %394 = sbr.rel (%p391) target = $region44
      $region43: #{tpu_custom_call.1} parent=5 // pred_region
        %s395 = ssub.s32 %s25, 1
        %s396 = sand.u32 %s52, 1
        %s397 = scalar_lea.sflag [#allocation9], %s396
        %s398 = sand.u32 %s52, 1
        %s399 = smul.addr %s398, 16
        %s400 = scalar_lea.vmem [#allocation8], %s399
        // Predicated region
        $region45: #{tpu_custom_call.1} parent=43 // pred_check
          %p401 = pneg %p65
        $region46: #{tpu_custom_call.1} parent=43 // pred_check_branch
          %403 = sbr.rel (%p401) target = $region48
        $region47: #{tpu_custom_call.1} parent=43 // pred_region
          %405 = dma.done %s397, 256
        $region48: #{tpu_custom_call.1} parent=43 // pred_fallthru
          _
        %s406 = sand.u32 %s30, 1
        %s407 = scalar_lea.sflag [#allocation12], %s406
        %s408 = sand.u32 %s80, 1
        %s409 = smul.addr %s408, 16
        %s410 = scalar_lea.vmem [#allocation11], %s409
        // Predicated region
        $region49: #{tpu_custom_call.1} parent=43 // pred_check
          %p411 = pneg %p93
        $region50: #{tpu_custom_call.1} parent=43 // pred_check_branch
          %413 = sbr.rel (%p411) target = $region52
        $region51: #{tpu_custom_call.1} parent=43 // pred_region
          %415 = dma.done %s407, 256
        $region52: #{tpu_custom_call.1} parent=43 // pred_fallthru
          _
        %s416 = sand.u32 %s30, 1
        %s417 = scalar_lea.sflag [#allocation12], %s416
        %s418 = sand.u32 %s108, 1
        %s419 = smul.addr %s418, 16
        %s420 = scalar_lea.vmem [#allocation13], %s419
        // Predicated region
        $region53: #{tpu_custom_call.1} parent=43 // pred_check
          %p421 = pneg %p121
        $region54: #{tpu_custom_call.1} parent=43 // pred_check_branch
          %423 = sbr.rel (%p421) target = $region56
        $region55: #{tpu_custom_call.1} parent=43 // pred_region
          %425 = dma.done %s417, 256
        $region56: #{tpu_custom_call.1} parent=43 // pred_fallthru
          _
        %s426 = sand.u32 %s30, 1
        %s427 = scalar_lea.sflag [#allocation15], %s426
        %s428 = sand.u32 %s136, 1
        %s429 = smul.addr %s428, 16
        %s430 = scalar_lea.vmem [#allocation14], %s429
        // Predicated region
        $region57: #{tpu_custom_call.1} parent=43 // pred_check
          %p431 = pneg %p149
        $region58: #{tpu_custom_call.1} parent=43 // pred_check_branch
          %433 = sbr.rel (%p431) target = $region60
        $region59: #{tpu_custom_call.1} parent=43 // pred_region
          %435 = dma.done %s427, 256
        $region60: #{tpu_custom_call.1} parent=43 // pred_fallthru
          _
        %s436 = sand.u32 %s30, 1
        %s437 = scalar_lea.sflag [#allocation15], %s436
        %s438 = sand.u32 %s164, 1
        %s439 = smul.addr %s438, 16
        %s440 = scalar_lea.vmem [#allocation16], %s439
        // Predicated region
        $region61: #{tpu_custom_call.1} parent=43 // pred_check
          %p441 = pneg %p177
        $region62: #{tpu_custom_call.1} parent=43 // pred_check_branch
          %443 = sbr.rel (%p441) target = $region64
        $region63: #{tpu_custom_call.1} parent=43 // pred_region
          %445 = dma.done %s437, 256
        $region64: #{tpu_custom_call.1} parent=43 // pred_fallthru
          _
        %s446 = sand.u32 %s192, 1
        %s447 = scalar_lea.sflag [#allocation18], %s446
        %s448 = sand.u32 %s192, 1
        %s449 = smul.addr %s448, 48
        %s450 = scalar_lea.vmem [#allocation17], %s449
        // Predicated region
        $region65: #{tpu_custom_call.1} parent=43 // pred_check
          %p451 = pneg %p205
        $region66: #{tpu_custom_call.1} parent=43 // pred_check_branch
          %453 = sbr.rel (%p451) target = $region68
        $region67: #{tpu_custom_call.1} parent=43 // pred_region
          %455 = dma.done %s447, 768
        $region68: #{tpu_custom_call.1} parent=43 // pred_fallthru
          _
        %s456 = sand.u32 %s52, 1
        %s457 = scalar_lea.sflag [#allocation9], %s456
        %s458 = sand.u32 %s52, 1
        %s459 = smul.addr %s458, 16
        %s460 = scalar_lea.vmem [#allocation8], %s459
        %p461 = pneg %p65
        %p462 = pneg %p62
        %s463 = sand.u32 %s30, 1
        %s464 = scalar_lea.sflag [#allocation12], %s463
        %s465 = sand.u32 %s80, 1
        %s466 = smul.addr %s465, 16
        %s467 = scalar_lea.vmem [#allocation11], %s466
        %p468 = pneg %p93
        %p469 = pneg %p90
        %s470 = sand.u32 %s30, 1
        %s471 = scalar_lea.sflag [#allocation12], %s470
        %s472 = sand.u32 %s108, 1
        %s473 = smul.addr %s472, 16
        %s474 = scalar_lea.vmem [#allocation13], %s473
        %p475 = pneg %p121
        %p476 = pneg %p118
        %s477 = sand.u32 %s30, 1
        %s478 = scalar_lea.sflag [#allocation15], %s477
        %s479 = sand.u32 %s136, 1
        %s480 = smul.addr %s479, 16
        %s481 = scalar_lea.vmem [#allocation14], %s480
        %p482 = pneg %p149
        %p483 = pneg %p146
        %s484 = sand.u32 %s30, 1
        %s485 = scalar_lea.sflag [#allocation15], %s484
        %s486 = sand.u32 %s164, 1
        %s487 = smul.addr %s486, 16
        %s488 = scalar_lea.vmem [#allocation16], %s487
        %p489 = pneg %p177
        %p490 = pneg %p174
        %s491 = sand.u32 %s192, 1
        %s492 = scalar_lea.sflag [#allocation18], %s491
        %s493 = sand.u32 %s192, 1
        %s494 = smul.addr %s493, 48
        %s495 = scalar_lea.vmem [#allocation17], %s494
        %p496 = pneg %p205
        %p497 = pneg %p202
        %p498 = pneg %p226
        %p499 = pneg %p223
        %s500 = smul.u32 2, %s35
        %s501 = smul.u32 2, %s35
        %s502 = smul.u32 2, %s35
        %s503 = smul.u32 2, %s35
        %s504 = smul.u32 2, %s35
        %s505 = smul.u32 2, %s35
        %p506 = scmp.eq.s32.totalorder %s34, 0
        %p507 = scmp.eq.s32.totalorder %s35, 0
        %p508 = pnand %p506, %p507
        %p509 = pneg %p508
        // Predicated region
        $region69: #{tpu_custom_call.1} parent=43 // pred_check
          _
        $region70: #{tpu_custom_call.1} parent=43 // pred_check_branch
          %511 = sbr.rel (%p508) target = $region72
        $region71: #{tpu_custom_call.1} parent=43 // pred_region
          %vm512 = vcmask 122880
          %513 = vst.msk [vmem:[#allocation2] sm:$0x1] %vm512, 0.0
          %514 = vst.msk [vmem:[#allocation3] sm:$0x1] %vm512, 0.0
          %515 = vst.msk [vmem:[#allocation4] sm:$0x1] %vm512, 0.0
          %516 = vst.msk [vmem:[#allocation5] sm:$0x1] %vm512, 0.0
        $region72: #{tpu_custom_call.1} parent=43 // pred_fallthru
          _
        %v517 = vld [vmem:[%s400] sm:$0xff]
        %v518 = vld [vmem:[%s400 + $0x8] sm:$0xff]
        %v519 = vld [vmem:[%s410] sm:$0xff]
        %v520 = vld [vmem:[%s410 + $0x8] sm:$0xff]
        %v521 = vld [vmem:[%s420] sm:$0xff]
        %v522 = vld [vmem:[%s420 + $0x8] sm:$0xff]
        %v523 = vld [vmem:[%s430] sm:$0xff]
        %v524 = vld [vmem:[%s430 + $0x8] sm:$0xff]
        %v525 = vld [vmem:[%s440] sm:$0xff]
        %v526 = vld [vmem:[%s440 + $0x8] sm:$0xff]
        %v527 = vld [vmem:[%s450] sm:$0xff]
        %v528 = vld [vmem:[%s450 + $0x8] sm:$0xff]
        %s529 = scalar_lea.vmem %s450, 16 [#allocation17]
        %v530 = vld [vmem:[%s529] sm:$0xff]
        %v531 = vld [vmem:[%s529 + $0x8] sm:$0xff]
        %s532 = scalar_lea.vmem %s450, 32 [#allocation17]
        %v533 = vld [vmem:[%s532] sm:$0xff]
        %v534 = vld [vmem:[%s532 + $0x8] sm:$0xff]
        %v535 = vsub.f32 %v517, %v523
        %v536 = vsub.f32 %v518, %v524
        %v537 = vsub.f32 %v519, %v523
        %v538 = vsub.f32 %v520, %v524
        %v539 = vsub.f32 %v521, %v523
        %v540 = vsub.f32 %v522, %v524
        %v541 = vmul.f32 %v535, %v535
        %v542 = vmul.f32 %v536, %v536
        %v543 = vmul.f32 %v537, %v537
        %v544 = vmul.f32 %v538, %v538
        %v545 = vmul.f32 %v543, 0.5
        %v546 = vmul.f32 %v544, 0.5
        %v547 = vadd.f32 %v541, %v545
        %v548 = vadd.f32 %v542, %v546
        %v549 = vmul.f32 %v539, %v539
        %v550 = vmul.f32 %v540, %v540
        %v551 = vmul.f32 %v549, 0.5
        %v552 = vmul.f32 %v550, 0.5
        %v553 = vadd.f32 %v547, %v551
        %v554 = vadd.f32 %v548, %v552
        %v555 = vmul.f32 %v553, %v525
        %v556 = vmul.f32 %v554, %v526
        %v557 = vld [vmem:[#allocation3] sm:$0x1]
        %vm558 = vcmask 130048
        %v559 = vsel %vm558, %v555, 0.0
        %v560 = vsel %vm558, %v556, 0.0
        %v561 = vadd.f32 %v559, %v560
        %v562 = vrot.slane %v561, 4
        %v563 = vadd.f32 %v561, %v562
        %v564 = vrot.slane %v563, 2
        %v565 = vadd.f32 %v563, %v564
        %v566 = vrot.slane %v565, 1
        %v567 = vadd.f32 %v565, %v566
        %v568 = vadd.f32 %v557, %v567
        %vm569 = vcmask 122880
        %570 = vst.msk [vmem:[#allocation3] sm:$0x1] %vm569, %v568
        %v571 = vld [vmem:[#allocation2] sm:$0x1]
        %v572 = vsel %vm558, %v525, 0.0
        %v573 = vsel %vm558, %v526, 0.0
        %v574 = vadd.f32 %v572, %v573
        %v575 = vrot.slane %v574, 4
        %v576 = vadd.f32 %v574, %v575
        %v577 = vrot.slane %v576, 2
        %v578 = vadd.f32 %v576, %v577
        %v579 = vrot.slane %v578, 1
        %v580 = vadd.f32 %v578, %v579
        %v581 = vadd.f32 %v571, %v580
        %582 = vst.msk [vmem:[#allocation2] sm:$0x1] %vm569, %v581
        %585 = vrot.lane.b32.xlu0 %v517, 127
        %v586 = vpop.permute.xlu0 %585
        %587 = vrot.lane.b32.xlu0 %v518, 127
        %v588 = vpop.permute.xlu0 %587
        %v591 = vsub.f32 %v517, %v586
        %v592 = vsub.f32 %v518, %v588
        %v593 = vand.u32 2147483647, %v591
        %v594 = vand.u32 2147483647, %v592
        %597 = vrot.lane.b32.xlu0 %v527, 127
        %v598 = vpop.permute.xlu0 %597
        %599 = vrot.lane.b32.xlu0 %v528, 127
        %v600 = vpop.permute.xlu0 %599
        %v603 = vsub.f32 %v527, %v598
        %v604 = vsub.f32 %v528, %v600
        %v605 = vand.u32 2147483647, %v603
        %v606 = vand.u32 2147483647, %v604
        %609 = vrot.lane.b32.xlu0 %v530, 127
        %v610 = vpop.permute.xlu0 %609
        %611 = vrot.lane.b32.xlu0 %v531, 127
        %v612 = vpop.permute.xlu0 %611
        %v615 = vsub.f32 %v530, %v610
        %v616 = vsub.f32 %v531, %v612
        %v617 = vand.u32 2147483647, %v615
        %v618 = vand.u32 2147483647, %v616
        %v619 = vadd.f32 %v605, %v617
        %v620 = vadd.f32 %v606, %v618
        %623 = vrot.lane.b32.xlu0 %v533, 127
        %v624 = vpop.permute.xlu0 %623
        %625 = vrot.lane.b32.xlu0 %v534, 127
        %v626 = vpop.permute.xlu0 %625
        %v629 = vsub.f32 %v533, %v624
        %v630 = vsub.f32 %v534, %v626
        %v631 = vand.u32 2147483647, %v629
        %v632 = vand.u32 2147483647, %v630
        %v633 = vadd.f32 %v619, %v631
        %v634 = vadd.f32 %v620, %v632
        %v635 = vsub.f32 0.0, %v633
        %v636 = vsub.f32 0.0, %v634
        %v637 = vmul.f32 %v635, 0.33333334
        %v638 = vmul.f32 %v636, 0.33333334
        %v639 = vmul.f32 %v637, 1.442695
        %v640 = vpow.pop %v639
        %v641 = vmul.f32 %v638, 1.442695
        %v642 = vpow.pop %v641
        %v643 = vld [vmem:[#allocation4] sm:$0x1]
        %v644 = vmul.f32 %v593, %v640
        %v645 = vmul.f32 %v594, %v642
        %vm646 = vcmask 121856
        %v647 = vsel %vm646, %v644, 0.0
        %v648 = vsel %vm646, %v645, 0.0
        %v649 = vadd.f32 %v647, %v648
        %v650 = vrot.slane %v649, 4
        %v651 = vadd.f32 %v649, %v650
        %v652 = vrot.slane %v651, 2
        %v653 = vadd.f32 %v651, %v652
        %v654 = vrot.slane %v653, 1
        %v655 = vadd.f32 %v653, %v654
        %v656 = vadd.f32 %v643, %v655
        %vm657 = vcmask 114688
        %658 = vst.msk [vmem:[#allocation4] sm:$0x1] %vm657, %v656
        %vm659 = vcmask 1046528
        %v660 = vrot.slane %v517, 1
        %v661 = vrot.slane %v518, 1
        %v662 = vsel %vm659, %v660, %v661
        %v665 = vsub.f32 %v517, %v662
        %v666 = vsub.f32 %v518, %v661
        %v667 = vand.u32 2147483647, %v665
        %v668 = vand.u32 2147483647, %v666
        %v669 = vrot.slane %v527, 1
        %v670 = vrot.slane %v528, 1
        %v671 = vsel %vm659, %v669, %v670
        %v674 = vsub.f32 %v527, %v671
        %v675 = vsub.f32 %v528, %v670
        %v676 = vand.u32 2147483647, %v674
        %v677 = vand.u32 2147483647, %v675
        %v678 = vrot.slane %v530, 1
        %v679 = vrot.slane %v531, 1
        %v680 = vsel %vm659, %v678, %v679
        %v683 = vsub.f32 %v530, %v680
        %v684 = vsub.f32 %v531, %v679
        %v685 = vand.u32 2147483647, %v683
        %v686 = vand.u32 2147483647, %v684
        %v687 = vadd.f32 %v676, %v685
        %v688 = vadd.f32 %v677, %v686
        %v689 = vrot.slane %v533, 1
        %v690 = vrot.slane %v534, 1
        %v691 = vsel %vm659, %v689, %v690
        %v694 = vsub.f32 %v533, %v691
        %v695 = vsub.f32 %v534, %v690
        %v696 = vand.u32 2147483647, %v694
        %v697 = vand.u32 2147483647, %v695
        %v698 = vadd.f32 %v687, %v696
        %v699 = vadd.f32 %v688, %v697
        %v700 = vsub.f32 0.0, %v698
        %v701 = vsub.f32 0.0, %v699
        %v702 = vmul.f32 %v700, 0.33333334
        %v703 = vmul.f32 %v701, 0.33333334
        %v704 = vmul.f32 %v702, 1.442695
        %v705 = vpow.pop %v704
        %v706 = vmul.f32 %v703, 1.442695
        %v707 = vpow.pop %v706
        %v708 = vld [vmem:[#allocation5] sm:$0x1]
        %v709 = vmul.f32 %v667, %v705
        %v710 = vmul.f32 %v668, %v707
        %v711 = vsel %vm558, %v709, 0.0
        %vm712 = vcmask 129024
        %v713 = vsel %vm712, %v710, 0.0
        %v714 = vadd.f32 %v711, %v713
        %v715 = vrot.slane %v714, 4
        %v716 = vadd.f32 %v714, %v715
        %v717 = vrot.slane %v716, 2
        %v718 = vadd.f32 %v716, %v717
        %v719 = vrot.slane %v718, 1
        %v720 = vadd.f32 %v718, %v719
        %v721 = vadd.f32 %v708, %v720
        %722 = vst.msk [vmem:[#allocation5] sm:$0x1] %vm569, %v721
        %p723 = scmp.gt.s32.totalorder %s35, 0
        // Predicated region
        $region73: #{tpu_custom_call.1} parent=43 // pred_check
          %p724 = pneg %p723
        $region74: #{tpu_custom_call.1} parent=43 // pred_check_branch
          %726 = sbr.rel (%p724) target = $region76
        $region75: #{tpu_custom_call.1} parent=43 // pred_region
          %v727 = vld [vmem:[#allocation6] sm:$0x1]
          %v728 = vsub.f32 %v727, %v517
          %v729 = vand.u32 2147483647, %v728
          %v730 = vld [vmem:[#allocation7] sm:$0x1]
          %v731 = vsub.f32 %v730, %v527
          %v732 = vand.u32 2147483647, %v731
          %v733 = vld [vmem:[#allocation7 + $0x1] sm:$0x1]
          %v734 = vsub.f32 %v733, %v530
          %v735 = vand.u32 2147483647, %v734
          %v736 = vadd.f32 %v732, %v735
          %v737 = vld [vmem:[#allocation7 + $0x2] sm:$0x1]
          %v738 = vsub.f32 %v737, %v533
          %v739 = vand.u32 2147483647, %v738
          %v740 = vadd.f32 %v736, %v739
          %v741 = vsub.f32 0.0, %v740
          %v742 = vmul.f32 %v741, 0.33333334
          %v743 = vmul.f32 %v742, 1.442695
          %v744 = vpow.pop %v743
          %v745 = vld [vmem:[#allocation5] sm:$0x1]
          %v746 = vmul.f32 %v729, %v744
          %v747 = vadd.f32 %v745, %v746
          %748 = vst.msk [vmem:[#allocation5] sm:$0x1] %vm569, %v747
        $region76: #{tpu_custom_call.1} parent=43 // pred_fallthru
          _
        %vm749 = vcmask 130055
        %750 = vst.msk [vmem:[#allocation6 - $0x7] sm:$0x80] %vm749, %v518
        %751 = vst.msk [vmem:[#allocation7 - $0x7] sm:$0x80] %vm749, %v528
        %752 = vst.msk [vmem:[#allocation7 - $0x6] sm:$0x80] %vm749, %v531
        %753 = vst.msk [vmem:[#allocation7 - $0x5] sm:$0x80] %vm749, %v534
        %p754 = scmp.eq.s32.totalorder %s34, 1
        %p755 = pnand %p754, %p507
        %p756 = pneg %p755
        // Predicated region
        $region77: #{tpu_custom_call.1} parent=43 // pred_check
          _
        $region78: #{tpu_custom_call.1} parent=43 // pred_check_branch
          %758 = sbr.rel (%p755) target = $region80
        $region79: #{tpu_custom_call.1} parent=43 // pred_region
          %v759 = vld [vmem:[#allocation2] sm:$0x1]
          %v760 = vsel %vm569, %v759, 0.0
          %761 = vadd.xlane.f32.xlu0 %v760
          %v762 = vpop.xlane.xlu0 %761
          %v763 = vrot.slane %v762, 4
          %v764 = vadd.f32 %v762, %v763
          %v765 = vrot.slane %v764, 2
          %v766 = vadd.f32 %v764, %v765
          %v767 = vrot.slane %v766, 1
          %v768 = vadd.f32 %v766, %v767
          %s769 = vtos %v768
          %v770 = vld [vmem:[#allocation3] sm:$0x1]
          %v771 = vsel %vm569, %v770, 0.0
          %772 = vadd.xlane.f32.xlu0 %v771
          %v773 = vpop.xlane.xlu0 %772
          %v774 = vrot.slane %v773, 4
          %v775 = vadd.f32 %v773, %v774
          %v776 = vrot.slane %v775, 2
          %v777 = vadd.f32 %v775, %v776
          %v778 = vrot.slane %v777, 1
          %v779 = vadd.f32 %v777, %v778
          %s780 = vtos %v779
          %v781 = vstv %s769
          %v782 = vrcp.pop %v781
          %v783 = vmul.f32 %v781, %v782
          %v784 = vsub.f32 1.0, %v783
          %v785 = vmul.f32 %v782, %v784
          %v786 = vadd.f32 %v782, %v785
          %vm787 = vweird.f32 %v781
          %vm788 = vweird.f32 %v782
          %vm789 = vmor %vm787, %vm788
          %v790 = vsel %vm789, %v782, %v786
          %v791 = vand.u32 2147483647, %v781
          %vm792 = vcmp.eq.f32.partialorder %v791, 8.507059e+37
          %v793 = vand.u32 %v781, 2147483648
          %v794 = vor.u32 1.1754944e-38, %v793
          %v795 = vsel %vm792, %v794, %v790
          %s796 = vtos %v795
          %s797 = smul.f32 %s780, %s796
          %v798 = vld [vmem:[#allocation4] sm:$0x1]
          %v799 = vsel %vm569, %v798, 0.0
          %800 = vadd.xlane.f32.xlu0 %v799
          %v801 = vpop.xlane.xlu0 %800
          %v802 = vrot.slane %v801, 4
          %v803 = vadd.f32 %v801, %v802
          %v804 = vrot.slane %v803, 2
          %v805 = vadd.f32 %v803, %v804
          %v806 = vrot.slane %v805, 1
          %v807 = vadd.f32 %v805, %v806
          %s808 = vtos %v807
          %s809 = smul.f32 %s808, 0.0020833334
          %v810 = vld [vmem:[#allocation5] sm:$0x1]
          %v811 = vsel %vm569, %v810, 0.0
          %812 = vadd.xlane.f32.xlu0 %v811
          %v813 = vpop.xlane.xlu0 %812
          %v814 = vrot.slane %v813, 4
          %v815 = vadd.f32 %v813, %v814
          %v816 = vrot.slane %v815, 2
          %v817 = vadd.f32 %v815, %v816
          %v818 = vrot.slane %v817, 1
          %v819 = vadd.f32 %v817, %v818
          %s820 = vtos %v819
          %s821 = smul.f32 %s820, 0.0020833334
          %s822 = sadd.f32 %s809, %s821
          %s823 = smul.f32 %s822, 0.005
          %s824 = sadd.f32 %s797, %s823
          %s825 = scalar_lea.smem [#allocation19], 0
          %826 = sst [smem:[%s825]] %s824
        $region80: #{tpu_custom_call.1} parent=43 // pred_fallthru
          _
        // Predicated region
        $region81: #{tpu_custom_call.1} parent=43 // pred_check
          %p827 = pneg %p223
        $region82: #{tpu_custom_call.1} parent=43 // pred_check_branch
          %829 = sbr.rel (%p827) target = $region84
        $region83: #{tpu_custom_call.1} parent=43 // pred_region
          %831 = vsyncadd [#allocation10], 0
          %s833 = sshll.u32 %s6, 4
          %s834 = int_to_ptr.hbm [resolvable:$true] %s833
          %836 = dma.smem_to_hbm [#allocation19], 16, %s834, [#allocation10]
        $region84: #{tpu_custom_call.1} parent=43 // pred_fallthru
          _
        // Predicated region
        $region85: #{tpu_custom_call.1} parent=43 // pred_check
          %p837 = pneg %p223
        $region86: #{tpu_custom_call.1} parent=43 // pred_check_branch
          %839 = sbr.rel (%p837) target = $region88
        $region87: #{tpu_custom_call.1} parent=43 // pred_region
          %841 = dma.done [#allocation10], 16
        $region88: #{tpu_custom_call.1} parent=43 // pred_fallthru
          _
        %842 = sfence
      $region44: #{tpu_custom_call.1} parent=5 // pred_fallthru
        _
      %p843 = scmp.le.s32.totalorder 2, %s25
      // Predicated region
      $region89: #{tpu_custom_call.1} parent=5 // pred_check
        %p844 = pneg %p843
      $region90: #{tpu_custom_call.1} parent=5 // pred_check_branch
        %846 = sbr.rel (%p844) target = $region92
      $region91: #{tpu_custom_call.1} parent=5 // pred_region
        %s847 = ssub.s32 %s25, 2
      $region92: #{tpu_custom_call.1} parent=5 // pred_fallthru
        _
    $region6: #{tpu_custom_call.1} parent=1 // loop_footer
      %s29 = sadd.s32 1, %s25
    $region7: #{tpu_custom_call.1} parent=1 // loop_footer_branch
      %24 = sbr.rel target = $region3
    $region8: #{tpu_custom_call.1} parent=1 // loop_exit
      _
    %848 = vsyncpa [#allocation9], 1
    %s849 = scalar_lea.sflag [#allocation9], 1
    %850 = vsyncpa %s849, 1
    %851 = vsyncpa [#allocation12], 1
    %s852 = scalar_lea.sflag [#allocation12], 1
    %853 = vsyncpa %s852, 1
    %854 = vsyncpa [#allocation15], 1
    %s855 = scalar_lea.sflag [#allocation15], 1
    %856 = vsyncpa %s855, 1
    %857 = vsyncpa [#allocation18], 1
    %s858 = scalar_lea.sflag [#allocation18], 1
    %859 = vsyncpa %s858, 1
    %860 = vsyncpa [#allocation10], 1
    %s861 = scalar_lea.sflag [#allocation10], 1
    %862 = vsyncpa %s861, 1

</llo_original>
